<compile_context>
chip_gen: v5e
topology: v5e:2x2
jax: 0.10.0
libtpu: 0.0.40
codegen_flags: <defaults>
</compile_context>

<pallas_src>
import jax
import jax.numpy as jnp
from jax.experimental import pallas as pl
from jax.experimental.pallas import tpu as pltpu

TARGET_BLOCK_BYTES = 8 << 20   # ~8 MiB per block (good for v6e/v7x, fine on v5e)
SMALL_BYTES = 1 << 20          # below this, a single block / grid=(1,) is fine


def _swish_kernel(x_ref, o_ref):
    xf = x_ref[...].astype(jnp.float32)
    # silu(x) = x * sigmoid(x); sigmoid via tanh is a single EUP op, exact,
    # and saturates cleanly for large |x| (no exp overflow, no approx recip).
    sig = 0.5 * (jnp.tanh(0.5 * xf) + 1.0)
    o_ref[...] = (xf * sig).astype(o_ref.dtype)


def _round_up(a: int, b: int) -> int:
    return -(-a // b) * b


def _choose_tr(rows: int, lanes: int, itemsize: int, sub_mult: int) -> int:
    """Rows per block: big (target ~8 MiB) but never a single-step grid for
    arrays above ~1 MiB, preferring an even step count (v7x megacore)."""
    max_tr = max(
        sub_mult,
        (TARGET_BLOCK_BYTES // (lanes * itemsize)) // sub_mult * sub_mult,
    )
    total_bytes = rows * lanes * itemsize
    if total_bytes <= SMALL_BYTES and rows <= max_tr:
        # Tiny array: one full-extent block (full array dim is always legal).
        return rows
    min_steps = 4 if total_bytes >= 4 * SMALL_BYTES else 2
    tr = min(max_tr, max(sub_mult, _round_up(pl.cdiv(rows, min_steps), sub_mult)))
    steps = pl.cdiv(rows, tr)
    if steps > 1 and steps % 2 == 1:
        # Nudge toward an even step count so both v7x TensorCores stay busy.
        tr_alt = max(sub_mult, _round_up(pl.cdiv(rows, steps + 1), sub_mult))
        if pl.cdiv(rows, tr_alt) % 2 == 0:
            tr = tr_alt
    return tr


def _swish_flat(x_flat: jax.Array) -> jax.Array:
    """SiLU on a flat array whose size is a multiple of 128."""
    n = x_flat.size
    dtype = x_flat.dtype
    itemsize = jnp.dtype(dtype).itemsize

    # Widest lane-dense last dim that divides n -> unmasked stores, contiguous DMA.
    lanes = 128
    for cand in (1024, 512, 256):
        if n % cand == 0:
            lanes = cand
            break
    rows = n // lanes

    # Sublane alignment by packing: f32 -> 8, bf16 -> 16, int8/fp8 -> 32.
    sub_mult = max(8, 32 // itemsize)
    tr = _choose_tr(rows, lanes, itemsize, sub_mult)
    grid_steps = pl.cdiv(rows, tr)  # ragged last block is fine (masked store)

    x2d = x_flat.reshape(rows, lanes)
    block_bytes = tr * lanes * itemsize
    # in + out, double-buffered, plus headroom; stays well under v7x's 64 MiB.
    vmem_limit = min(56 << 20, max(16 << 20, 4 * block_bytes + (4 << 20)))

    cost = pl.CostEstimate(
        flops=4 * n,
        transcendentals=n,                 # one tanh per element
        bytes_accessed=2 * n * itemsize,   # read + write, HBM-bound
    )

    out = pl.pallas_call(
        _swish_kernel,
        out_shape=jax.ShapeDtypeStruct((rows, lanes), dtype),
        grid_spec=pltpu.PrefetchScalarGridSpec(
            num_scalar_prefetch=0,
            grid=(grid_steps,),
            in_specs=[pl.BlockSpec((tr, lanes), lambda i: (i, 0))],
            out_specs=pl.BlockSpec((tr, lanes), lambda i: (i, 0)),
        ),
        compiler_params=pltpu.CompilerParams(
            dimension_semantics=("parallel",),
            vmem_limit_bytes=int(vmem_limit),
        ),
        cost_estimate=cost,
    )(x2d)
    return out.reshape(-1)


def swish(x: jax.Array) -> jax.Array:
    """Elementwise SiLU via Pallas. Works for any shape; layout-agnostic."""
    orig_shape = x.shape
    n = x.size
    if n == 0:
        return x

    x_flat = x.reshape(-1)
    if n % 128 == 0:
        return _swish_flat(x_flat).reshape(orig_shape)

    # Non-128-divisible total size: run the kernel on the aligned prefix and
    # compute the (< 128 element) tail in plain JAX — no whole-array pad/slice.
    n_main = (n // 128) * 128
    if n_main == 0:
        return jax.nn.silu(x)  # fewer than 128 elements: kernel not worth it
    head = _swish_flat(x_flat[:n_main])
    tail = jax.nn.silu(x_flat[n_main:])
    return jnp.concatenate([head, tail]).reshape(orig_shape)


if __name__ == "__main__":
    key = jax.random.PRNGKey(0)

    # NCHW activation like the PyTorch module would see: batch=2, C=4, 16x16.
    x = jax.random.normal(key, (2, 4, 16, 16), dtype=jnp.float32)
    y = jax.block_until_ready(swish(x))
    y_ref = jax.nn.silu(x)
    assert y.shape == x.shape and y.dtype == x.dtype
    assert jnp.allclose(y, y_ref, atol=1e-5, rtol=1e-5)

    # Odd-sized input exercises the aligned-prefix + plain-JAX-tail path.
    x2 = jax.random.normal(jax.random.PRNGKey(0), (3, 5, 7), dtype=jnp.float32)
    y2 = jax.block_until_ready(swish(x2))
    assert y2.shape == x2.shape and y2.dtype == x2.dtype
    assert jnp.allclose(y2, jax.nn.silu(x2), atol=1e-5, rtol=1e-5)

    # >1 MiB activation exercises the multi-step grid with a ragged last block.
    x3 = jax.random.normal(jax.random.PRNGKey(0), (1, 8, 224, 224), dtype=jnp.float32)
    y3 = jax.block_until_ready(swish(x3))
    assert y3.shape == x3.shape and y3.dtype == x3.dtype
    assert jnp.allclose(y3, jax.nn.silu(x3), atol=1e-5, rtol=1e-5)

    print("KERNEL_OK")
</pallas_src>

<mosaic_0001>
module attributes {stable_mosaic.version = 11 : i64} {
  func.func @_swish_kernel(%arg0: i32, %arg1: memref<2x1024xf32, #tpu.memory_space<vmem>>, %arg2: memref<2x1024xf32, #tpu.memory_space<vmem>>) attributes {dimension_semantics = [#tpu.dimension_semantics<parallel>], iteration_bounds = array<i64: 1>, scalar_prefetch = 0 : i64, scratch_operands = 0 : i64, tpu.core_type = #tpu.core_type<tc>, window_params = [{transform_indices = @transform_0, window_bounds = array<i64: 2, 1024>}, {transform_indices = @transform_1, window_bounds = array<i64: 2, 1024>}]} {
    %c0 = arith.constant 0 : index
    %c0_0 = arith.constant 0 : index
    %0 = vector.load %arg1[%c0, %c0_0] : memref<2x1024xf32, #tpu.memory_space<vmem>>, vector<2x1024xf32>
    %cst = arith.constant 5.000000e-01 : f32
    %1 = vector.broadcast %cst : f32 to vector<2x1024xf32>
    %2 = arith.mulf %1, %0 : vector<2x1024xf32>
    %3 = math.tanh %2 : vector<2x1024xf32>
    %cst_1 = arith.constant 1.000000e+00 : f32
    %4 = vector.broadcast %cst_1 : f32 to vector<2x1024xf32>
    %5 = arith.addf %3, %4 : vector<2x1024xf32>
    %cst_2 = arith.constant 5.000000e-01 : f32
    %6 = vector.broadcast %cst_2 : f32 to vector<2x1024xf32>
    %7 = arith.mulf %6, %5 : vector<2x1024xf32>
    %8 = arith.mulf %0, %7 : vector<2x1024xf32>
    %c0_3 = arith.constant 0 : index
    %c0_4 = arith.constant 0 : index
    %9 = vector.load %arg2[%c0_3, %c0_4] : memref<2x1024xf32, #tpu.memory_space<vmem>>, vector<2x1024xf32>
    tpu.vector_store %arg2[%c0_3, %c0_4], %8 {strides = array<i32>} : memref<2x1024xf32, #tpu.memory_space<vmem>>, vector<2x1024xf32>,
    return
  }
  func.func @transform_0(%arg0: i32) -> (i32, i32) {
    %c0_i32 = arith.constant 0 : i32
    %c0_i32_0 = arith.constant 0 : i32
    return %arg0, %c0_i32 : i32, i32
  }
  func.func @transform_1(%arg0: i32) -> (i32, i32) {
    %c0_i32 = arith.constant 0 : i32
    %c0_i32_0 = arith.constant 0 : i32
    return %arg0, %c0_i32 : i32, i32
  }
}

</mosaic_0001>

<llo_original>
// kernel: tpu_custom_call.1
$region0: #{tpu_custom_call.1}
  #allocation0 [shape = 'u32[]', space=smem, size = 0x4, offset = 0x4, fixed_abs, tag = 'smem constant byte address 0x4 - core index']
  #allocation1 [shape = 'u32[72,128]{1,0:T(1,128)}', space=vmem, size = 0x9000, scoped, tag = 'internal scratch']
  %s0 = inlined_call_operand.hbm [shape: f32[2,1024], index: 0, kind: input, shape index: {}]
  %s1 = inlined_call_operand.hbm [shape: f32[2,1024], index: 1, kind: output, shape index: {}]
  %s2 = sld [smem:[#allocation0]]
  $region18: #{tpu_custom_call.1} parent=0
    _
  %s4 = ssub.s32 1, %s2
  %s5 = scalar_select 0, %s4, %s2
  $region1: #{tpu_custom_call.1} parent=0
    #allocation2 [shape = 'u8[8192]{0}', space=vmem, size = 0x2000, scoped, tag = 'input window, operand 0, single buffered']
    #allocation3 [shape = 's32[1]{0}', space=sflag, size = 0x4, scoped, tag = 'scoped memory for tpu_custom_call.1']
    #allocation4 [shape = 's32[1]{0}', space=sflag, size = 0x4, scoped, tag = 'scoped memory for tpu_custom_call.1']
    #allocation5 [shape = 'u8[8192]{0}', space=vmem, size = 0x2000, scoped, tag = 'output window, operand 0, single buffered']
    %6 = vsyncpa [#allocation3], 0
    %7 = vsyncpa [#allocation4], 0
    // Predicated region
    $region2: #{tpu_custom_call.1} parent=1 // pred_check
      _
    $region3: #{tpu_custom_call.1} parent=1 // pred_check_branch
      %9 = sbr.rel (0) target = $region5
    $region4: #{tpu_custom_call.1} parent=1 // pred_region
      %11 = vsyncadd [#allocation3], 0
      %s13 = sshll.u32 %s0, 4
      %s14 = int_to_ptr.hbm [resolvable:$true] %s13
      %s15 = sshll.u32 [#allocation2], 4
      %s16 = int_to_ptr.vmem [resolvable:$true] %s15
      %18 = dma.hbm_to_vmem [thread:$0]  %s14, 256, %s16, [#allocation3]
    $region5: #{tpu_custom_call.1} parent=1 // pred_fallthru
      _
    // Predicated region
    $region6: #{tpu_custom_call.1} parent=1 // pred_check
      _
    $region7: #{tpu_custom_call.1} parent=1 // pred_check_branch
      %20 = sbr.rel (0) target = $region9
    $region8: #{tpu_custom_call.1} parent=1 // pred_region
      %22 = dma.done [#allocation3], 256
    $region9: #{tpu_custom_call.1} parent=1 // pred_fallthru
      _
    %v23 = vld [vmem:[#allocation2] sm:$0xff]
    %v24 = vld [vmem:[#allocation2 + $0x8] sm:$0xff]
    %v25 = vmul.f32 %v23, 0.5
    %v26 = vmul.f32 %v24, 0.5
    %v27 = vtanh.pop %v25
    %v28 = vtanh.pop %v26
    %v29 = vadd.f32 %v27, 1.0
    %v30 = vadd.f32 %v28, 1.0
    %v31 = vmul.f32 %v29, 0.5
    %v32 = vmul.f32 %v30, 0.5
    %v33 = vmul.f32 %v23, %v31
    %v34 = vmul.f32 %v24, %v32
    %35 = vst [vmem:[#allocation5] sm:$0xff] %v33
    %36 = vst [vmem:[#allocation5 + $0x8] sm:$0xff] %v34
    // Predicated region
    $region10: #{tpu_custom_call.1} parent=1 // pred_check
      _
    $region11: #{tpu_custom_call.1} parent=1 // pred_check_branch
      %38 = sbr.rel (0) target = $region13
    $region12: #{tpu_custom_call.1} parent=1 // pred_region
      %40 = vsyncadd [#allocation4], 0
      %s42 = sshll.u32 [#allocation5], 4
      %s43 = int_to_ptr.vmem [resolvable:$true] %s42
      %s44 = sshll.u32 %s1, 4
      %s45 = int_to_ptr.hbm [resolvable:$true] %s44
      %47 = dma.vmem_to_hbm [thread:$0]  %s43, 256, %s45, [#allocation4]
    $region13: #{tpu_custom_call.1} parent=1 // pred_fallthru
      _
    // Predicated region
    $region14: #{tpu_custom_call.1} parent=1 // pred_check
      _
    $region15: #{tpu_custom_call.1} parent=1 // pred_check_branch
      %49 = sbr.rel (0) target = $region17
    $region16: #{tpu_custom_call.1} parent=1 // pred_region
      %51 = dma.done [#allocation4], 256
    $region17: #{tpu_custom_call.1} parent=1 // pred_fallthru
      _
    %52 = vsyncpa [#allocation3], 1
    %53 = vsyncpa [#allocation4], 1

</llo_original>
